<compile_context>
chip_gen: v7x
topology: tpu7x:2x2x1
jax: 0.10.0
libtpu: 0.0.40
codegen_flags: <defaults>
</compile_context>

<pallas_src>
import functools

import jax
import jax.numpy as jnp
from jax import lax
from jax.experimental import pallas as pl
from jax.experimental.pallas import tpu as pltpu


def _layernorm_channel_kernel(x_ref, w_ref, b_ref, o_ref, *, eps: float):
    # x_ref: (TB, C, TL)   w_ref / b_ref: (1, C, TL)   o_ref: (TB, C, TL)
    x = x_ref[...].astype(jnp.float32)
    mean = jnp.mean(x, axis=1, keepdims=True)              # (TB, 1, TL) sublane reduce
    msq = jnp.mean(x * x, axis=1, keepdims=True)           # E[x^2]
    var = jnp.maximum(msq - mean * mean, 0.0)               # biased var (F.layer_norm)
    inv = lax.rsqrt(var + eps)
    o_ref[...] = ((x - mean) * inv * w_ref[...] + b_ref[...]).astype(o_ref.dtype)


_TARGET_BLOCK_BYTES = 2 << 20  # ~2 MiB per x block (input dtype)


def _choose_tiles(B: int, C: int, L: int, itemsize: int):
    """Pick (TB, TL): batch / lane tile sizes targeting ~2 MiB per x block."""
    col_bytes = C * itemsize                              # bytes per lane position
    tl = (_TARGET_BLOCK_BYTES // max(col_bytes, 1)) // 128 * 128
    tl = max(tl, 128)                                     # lane-dense floor
    if tl >= L:
        # Whole L fits in one tile -> block over batch instead to hit the byte target.
        tl = L                                            # full-extent last dim is legal
        plane_bytes = C * L * itemsize
        tb = max(1, min(B, _TARGET_BLOCK_BYTES // max(plane_bytes, 1)))
    else:
        tb = 1                                            # tl is a multiple of 128

    # v7x megacore: guarantee >= 2 "parallel" grid steps when the shape allows.
    if pl.cdiv(B, tb) * pl.cdiv(L, tl) < 2:
        if B >= 2:
            tb = pl.cdiv(B, 2)
        elif L > 128:
            half = ((pl.cdiv(L, 2) + 127) // 128) * 128
            if half < L:
                tl = half
    return tb, tl


def _vmem_limit_bytes(tb: int, C: int, tl: int, in_itemsize: int, out_itemsize: int) -> int:
    """Scoped-VMEM limit from actual block bytes, capped by physical capacity."""
    blk_in = tb * C * tl * in_itemsize
    blk_out = tb * C * tl * out_itemsize
    blk_f32 = tb * C * tl * 4                             # kernel f32 intermediates
    wb = 2 * C * tl * 4                                   # weight + bias blocks (f32)
    est = 2 * (blk_in + blk_out) + 3 * blk_f32 + 2 * wb   # double-buffered io + temps
    limit = max(32 << 20, int(est * 1.5) + (4 << 20))
    try:
        cap = int(pltpu.get_tpu_info().vmem_capacity_bytes)
    except Exception:
        cap = 64 << 20                                    # conservative: v7x physical VMEM
    return int(min(limit, max(32 << 20, cap - (16 << 20))))


def layer_norm_channel(x: jax.Array, weight: jax.Array, bias: jax.Array,
                       eps: float = 1e-5, *, _tile_override=None) -> jax.Array:
    """Forward of LayerNormChannel.  x: (B, C, L); weight, bias: (C,).  Returns (B, C, L)."""
    B, C, L = x.shape

    if _tile_override is not None:
        tb, tl = _tile_override                            # testing hook (ragged paths)
    else:
        tb, tl = _choose_tiles(B, C, L, x.dtype.itemsize)

    grid = (pl.cdiv(B, tb), pl.cdiv(L, tl))

    # Hoist the f32 cast + lane-dense broadcast of the affine params out of the loop:
    # constant index_map => fetched into VMEM once, reused for every grid step.
    w3 = jnp.broadcast_to(weight.astype(jnp.float32).reshape(1, C, 1), (1, C, tl))
    b3 = jnp.broadcast_to(bias.astype(jnp.float32).reshape(1, C, 1), (1, C, tl))

    kernel = functools.partial(_layernorm_channel_kernel, eps=eps)

    return pl.pallas_call(
        kernel,
        out_shape=jax.ShapeDtypeStruct((B, C, L), x.dtype),
        grid_spec=pltpu.PrefetchScalarGridSpec(
            num_scalar_prefetch=0,
            grid=grid,
            in_specs=[
                pl.BlockSpec((tb, C, tl), lambda b, l: (b, 0, l)),
                pl.BlockSpec((1, C, tl), lambda b, l: (0, 0, 0)),
                pl.BlockSpec((1, C, tl), lambda b, l: (0, 0, 0)),
            ],
            out_specs=pl.BlockSpec((tb, C, tl), lambda b, l: (b, 0, l)),
        ),
        compiler_params=pltpu.CompilerParams(
            dimension_semantics=("parallel", "parallel"),
            vmem_limit_bytes=_vmem_limit_bytes(tb, C, tl, x.dtype.itemsize,
                                               x.dtype.itemsize),
        ),
    )(x, w3, b3)


def _reference(x, weight, bias, eps):
    # Pure-JAX reference of the PyTorch forward.
    xt = jnp.transpose(x, (0, 2, 1))                     # (B, L, C)
    mean = jnp.mean(xt, axis=-1, keepdims=True)
    var = jnp.mean((xt - mean) ** 2, axis=-1, keepdims=True)
    ref = (xt - mean) / jnp.sqrt(var + eps) * weight + bias
    return jnp.transpose(ref, (0, 2, 1))                 # (B, C, L)


if __name__ == "__main__":
    eps = 1e-5
    key = jax.random.PRNGKey(0)
    k_x, k_w, k_b, k_x2, k_x3 = jax.random.split(key, 5)

    # ------------------------------------------------------------------ #
    # 1) Small shape from the module's forward, default params (ones/zeros).
    B, C, L = 2, 32, 16
    x = jax.random.normal(k_x, (B, C, L), dtype=jnp.float32)
    weight = jnp.ones((C,), dtype=jnp.float32)
    bias = jnp.zeros((C,), dtype=jnp.float32)
    out = jax.block_until_ready(layer_norm_channel(x, weight, bias, eps=eps))
    ref = _reference(x, weight, bias, eps)
    assert out.shape == (B, C, L)
    assert jnp.allclose(out, ref, atol=1e-5, rtol=1e-5)

    # 2) Non-trivial affine params (scale/shift path).
    weight2 = jax.random.normal(k_w, (C,), dtype=jnp.float32)
    bias2 = jax.random.normal(k_b, (C,), dtype=jnp.float32)
    out2 = jax.block_until_ready(layer_norm_channel(x, weight2, bias2, eps=eps))
    ref2 = _reference(x, weight2, bias2, eps)
    assert jnp.allclose(out2, ref2, atol=1e-5, rtol=1e-5)

    # 3) Ragged lane tile (L % 128 != 0 with TL=128) -> exercises masked stores.
    B3, C3, L3 = 2, 24, 300
    x3 = jax.random.normal(k_x2, (B3, C3, L3), dtype=jnp.float32)
    w3p = jax.random.normal(k_w, (C3,), dtype=jnp.float32)
    b3p = jax.random.normal(k_b, (C3,), dtype=jnp.float32)
    out3 = jax.block_until_ready(
        layer_norm_channel(x3, w3p, b3p, eps=eps, _tile_override=(1, 128)))
    ref3 = _reference(x3, w3p, b3p, eps)
    assert jnp.allclose(out3, ref3, atol=1e-5, rtol=1e-5)

    # 4) Batch-blocked path (small L, several batches share one block).
    B4, C4, L4 = 8, 16, 64
    x4 = jax.random.normal(k_x3, (B4, C4, L4), dtype=jnp.float32)
    w4 = jax.random.normal(k_w, (C4,), dtype=jnp.float32)
    b4 = jax.random.normal(k_b, (C4,), dtype=jnp.float32)
    out4 = jax.block_until_ready(layer_norm_channel(x4, w4, b4, eps=eps))
    ref4 = _reference(x4, w4, b4, eps)
    assert jnp.allclose(out4, ref4, atol=1e-5, rtol=1e-5)

    print("KERNEL_OK")
</pallas_src>

<mosaic_0001>
module attributes {stable_mosaic.version = 11 : i64} {
  func.func @_layernorm_channel_kernel(%arg0: i32, %arg1: i32, %arg2: memref<1x32x16xf32, #tpu.memory_space<vmem>>, %arg3: memref<1x32x16xf32, #tpu.memory_space<vmem>>, %arg4: memref<1x32x16xf32, #tpu.memory_space<vmem>>, %arg5: memref<1x32x16xf32, #tpu.memory_space<vmem>>) attributes {dimension_semantics = [#tpu.dimension_semantics<parallel>, #tpu.dimension_semantics<parallel>], iteration_bounds = array<i64: 2, 1>, scalar_prefetch = 0 : i64, scratch_operands = 0 : i64, tpu.core_type = #tpu.core_type<tc>, window_params = [{transform_indices = @transform_0, window_bounds = array<i64: 1, 32, 16>}, {pipeline_mode = #tpu.pipeline_mode<synchronous>, transform_indices = @transform_1, window_bounds = array<i64: 1, 32, 16>}, {pipeline_mode = #tpu.pipeline_mode<synchronous>, transform_indices = @transform_2, window_bounds = array<i64: 1, 32, 16>}, {transform_indices = @transform_3, window_bounds = array<i64: 1, 32, 16>}]} {
    %c0 = arith.constant 0 : index
    %c0_0 = arith.constant 0 : index
    %c0_1 = arith.constant 0 : index
    %0 = vector.load %arg2[%c0, %c0_0, %c0_1] : memref<1x32x16xf32, #tpu.memory_space<vmem>>, vector<1x32x16xf32>
    %cst = arith.constant dense<0.000000e+00> : vector<1x16xf32>
    %1 = vector.multi_reduction <add>, %0, %cst [1] : vector<1x32x16xf32> to vector<1x16xf32>
    %2 = vector.shape_cast %1 : vector<1x16xf32> to vector<1x1x16xf32>
    %cst_2 = arith.constant 3.200000e+01 : f32
    %3 = vector.broadcast %cst_2 : f32 to vector<1x1x16xf32>
    %4 = arith.divf %2, %3 : vector<1x1x16xf32>
    %5 = arith.mulf %0, %0 : vector<1x32x16xf32>
    %cst_3 = arith.constant dense<0.000000e+00> : vector<1x16xf32>
    %6 = vector.multi_reduction <add>, %5, %cst_3 [1] : vector<1x32x16xf32> to vector<1x16xf32>
    %7 = vector.shape_cast %6 : vector<1x16xf32> to vector<1x1x16xf32>
    %cst_4 = arith.constant 3.200000e+01 : f32
    %8 = vector.broadcast %cst_4 : f32 to vector<1x1x16xf32>
    %9 = arith.divf %7, %8 : vector<1x1x16xf32>
    %10 = arith.mulf %4, %4 : vector<1x1x16xf32>
    %11 = arith.subf %9, %10 : vector<1x1x16xf32>
    %cst_5 = arith.constant 0.000000e+00 : f32
    %12 = vector.broadcast %cst_5 : f32 to vector<1x1x16xf32>
    %13 = arith.maximumf %11, %12 : vector<1x1x16xf32>
    %cst_6 = arith.constant 9.99999974E-6 : f32
    %14 = vector.broadcast %cst_6 : f32 to vector<1x1x16xf32>
    %15 = arith.addf %13, %14 : vector<1x1x16xf32>
    %16 = math.rsqrt %15 : vector<1x1x16xf32>
    %17 = vector.broadcast %4 : vector<1x1x16xf32> to vector<1x32x16xf32>
    %18 = arith.subf %0, %17 : vector<1x32x16xf32>
    %19 = vector.broadcast %16 : vector<1x1x16xf32> to vector<1x32x16xf32>
    %20 = arith.mulf %18, %19 : vector<1x32x16xf32>
    %c0_7 = arith.constant 0 : index
    %c0_8 = arith.constant 0 : index
    %c0_9 = arith.constant 0 : index
    %21 = vector.load %arg3[%c0_7, %c0_8, %c0_9] : memref<1x32x16xf32, #tpu.memory_space<vmem>>, vector<1x32x16xf32>
    %22 = arith.mulf %20, %21 : vector<1x32x16xf32>
    %c0_10 = arith.constant 0 : index
    %c0_11 = arith.constant 0 : index
    %c0_12 = arith.constant 0 : index
    %23 = vector.load %arg4[%c0_10, %c0_11, %c0_12] : memref<1x32x16xf32, #tpu.memory_space<vmem>>, vector<1x32x16xf32>
    %24 = arith.addf %22, %23 : vector<1x32x16xf32>
    %c0_13 = arith.constant 0 : index
    %c0_14 = arith.constant 0 : index
    %c0_15 = arith.constant 0 : index
    %25 = vector.load %arg5[%c0_13, %c0_14, %c0_15] : memref<1x32x16xf32, #tpu.memory_space<vmem>>, vector<1x32x16xf32>
    tpu.vector_store %arg5[%c0_13, %c0_14, %c0_15], %24 {strides = array<i32>} : memref<1x32x16xf32, #tpu.memory_space<vmem>>, vector<1x32x16xf32>,
    return
  }
  func.func @transform_0(%arg0: i32, %arg1: i32) -> (i32, i32, i32) {
    %c0_i32 = arith.constant 0 : i32
    %c0_i32_0 = arith.constant 0 : i32
    return %arg0, %c0_i32, %arg1 : i32, i32, i32
  }
  func.func @transform_1(%arg0: i32, %arg1: i32) -> (i32, i32, i32) {
    %c0_i32 = arith.constant 0 : i32
    %c0_i32_0 = arith.constant 0 : i32
    %c0_i32_1 = arith.constant 0 : i32
    %c0_i32_2 = arith.constant 0 : i32
    return %c0_i32, %c0_i32_0, %c0_i32_1 : i32, i32, i32
  }
  func.func @transform_2(%arg0: i32, %arg1: i32) -> (i32, i32, i32) {
    %c0_i32 = arith.constant 0 : i32
    %c0_i32_0 = arith.constant 0 : i32
    %c0_i32_1 = arith.constant 0 : i32
    %c0_i32_2 = arith.constant 0 : i32
    return %c0_i32, %c0_i32_0, %c0_i32_1 : i32, i32, i32
  }
  func.func @transform_3(%arg0: i32, %arg1: i32) -> (i32, i32, i32) {
    %c0_i32 = arith.constant 0 : i32
    %c0_i32_0 = arith.constant 0 : i32
    return %arg0, %c0_i32, %arg1 : i32, i32, i32
  }
}

</mosaic_0001>

<llo_original>
// kernel: tpu_custom_call.1
$region0: #{tpu_custom_call.1}
  #allocation0 [shape = 'u32[]', space=smem, size = 0x4, offset = 0x4, fixed_abs, tag = 'smem constant byte address 0x4 - core index']
  #allocation1 [shape = 'u32[144,128]{1,0:T(1,128)}', space=vmem, size = 0x12000, scoped, tag = 'internal scratch']
  %s0 = inlined_call_operand.vmem [shape: f32[2,32,16], index: 0, kind: input, shape index: {}]
  %s1 = inlined_call_operand.vmem [shape: f32[1,32,16], index: 1, kind: input, shape index: {}]
  %s2 = inlined_call_operand.vmem [shape: f32[1,32,16], index: 2, kind: input, shape index: {}]
  %s3 = inlined_call_operand.vmem [shape: f32[2,32,16], index: 3, kind: output, shape index: {}]
  %s4 = sld [smem:[#allocation0]]
  $region45: #{tpu_custom_call.1} parent=0
    _
  %s6 = ssub.s32 1, %s4
  %s7 = scalar_select 0, %s6, %s4
  loop: start=0, step=1, limit=4
  $region2: #{tpu_custom_call.1} parent=0 // loop_pre_header
    _
  $region3: #{tpu_custom_call.1} parent=0 // loop_header
    %s9 = sphi 0, %s13
    %p10 = scmp.ge.s32.totalorder %s9, 4
    %s16 = sphi 0, %s28
    %s17 = sphi 0, %s24
    %s18 = sphi 0, %s16
    %s19 = sphi 0, %s17
    %s20 = sphi 0, %s18
    %s21 = sphi 0, %s19
    %s33 = sphi 0, %s35
    %s36 = sphi 0, %s33
    %s37 = sphi 0, %s36
    %s53 = sphi 0, %s37
    %s57 = sphi 0, %s57
    %s59 = sphi 0, %s57
    %s60 = sphi 0, %s59
    %s74 = sphi 0, %s60
    %s78 = sphi 0, %s78
    %s80 = sphi 0, %s78
    %s81 = sphi 0, %s80
    %s95 = sphi 0, %s81
    %s103 = sphi 0, %s105
    %s106 = sphi 0, %s103
    %s107 = sphi 0, %s106
    %s123 = sphi 0, %s107
  $region4: #{tpu_custom_call.1} parent=0 // loop_header_branch
    %12 = sbr.rel (%p10) target = $region8
  $region5: #{tpu_custom_call.1} parent=0 // loop_body
    %s14 = ssub.s32 %s9, 1
    %s15 = ssub.s32 %s9, 2
    %s22 = sadd.s32 1, %s17
    %p23 = scmp.ge.s32.totalorder %s22, 1
    %s24 = scalar_select %p23, 0, %s22
    %s25 = sadd.s32 1, %s16
    %s26 = scalar_select %p23, %s25, %s16
    %p27 = scmp.ge.s32.totalorder %s26, 2
    %s28 = scalar_select %p27, 0, %s26
    %s29 = ssub.s32 %s16, %s28
    %s30 = ssub.s32 %s17, %s24
    %s31 = sor.u32 %s29, %s30
    %p32 = scmp.eq.s32.totalorder %s31, 0
    %s34 = sadd.s32 %s33, 1
    %s35 = scalar_select %p32, %s33, %s34
    %p38 = pneg %p32
    %p39 = scmp.eq.s32.totalorder %s9, 1
    %p40 = por %p38, %p39
    %p41 = scmp.ne.s32.totalorder %s33, %s36
    %p42 = scmp.eq.s32.totalorder %s9, 0
    %p43 = por %p41, %p42
    %p44 = scmp.ne.s32.totalorder %s33, %s36
    %p45 = scmp.eq.s32.totalorder %s14, 1
    %p46 = por %p44, %p45
    %p47 = scmp.ne.s32.totalorder %s36, %s37
    %p48 = scmp.eq.s32.totalorder %s14, 0
    %p49 = por %p47, %p48
    %p50 = scmp.ne.s32.totalorder %s36, %s37
    %p51 = scmp.eq.s32.totalorder %s15, 1
    %p52 = por %p50, %p51
    %p54 = scmp.ne.s32.totalorder %s37, %s53
    %p55 = scmp.eq.s32.totalorder %s15, 0
    %p56 = por %p54, %p55
    %s58 = sadd.s32 %s57, 1
    %p61 = scmp.eq.s32.totalorder %s9, 1
    %p62 = scmp.ne.s32.totalorder %s57, %s59
    %p63 = scmp.eq.s32.totalorder %s9, 0
    %p64 = por %p62, %p63
    %p65 = scmp.ne.s32.totalorder %s57, %s59
    %p66 = scmp.eq.s32.totalorder %s14, 1
    %p67 = por %p65, %p66
    %p68 = scmp.ne.s32.totalorder %s59, %s60
    %p69 = scmp.eq.s32.totalorder %s14, 0
    %p70 = por %p68, %p69
    %p71 = scmp.ne.s32.totalorder %s59, %s60
    %p72 = scmp.eq.s32.totalorder %s15, 1
    %p73 = por %p71, %p72
    %p75 = scmp.ne.s32.totalorder %s60, %s74
    %p76 = scmp.eq.s32.totalorder %s15, 0
    %p77 = por %p75, %p76
    %s79 = sadd.s32 %s78, 1
    %p82 = scmp.eq.s32.totalorder %s9, 1
    %p83 = scmp.ne.s32.totalorder %s78, %s80
    %p84 = scmp.eq.s32.totalorder %s9, 0
    %p85 = por %p83, %p84
    %p86 = scmp.ne.s32.totalorder %s78, %s80
    %p87 = scmp.eq.s32.totalorder %s14, 1
    %p88 = por %p86, %p87
    %p89 = scmp.ne.s32.totalorder %s80, %s81
    %p90 = scmp.eq.s32.totalorder %s14, 0
    %p91 = por %p89, %p90
    %p92 = scmp.ne.s32.totalorder %s80, %s81
    %p93 = scmp.eq.s32.totalorder %s15, 1
    %p94 = por %p92, %p93
    %p96 = scmp.ne.s32.totalorder %s81, %s95
    %p97 = scmp.eq.s32.totalorder %s15, 0
    %p98 = por %p96, %p97
    %s99 = ssub.s32 %s16, %s28
    %s100 = ssub.s32 %s17, %s24
    %s101 = sor.u32 %s99, %s100
    %p102 = scmp.eq.s32.totalorder %s101, 0
    %s104 = sadd.s32 %s103, 1
    %s105 = scalar_select %p102, %s103, %s104
    %p108 = pneg %p102
    %p109 = scmp.eq.s32.totalorder %s9, 1
    %p110 = por %p108, %p109
    %p111 = scmp.ne.s32.totalorder %s103, %s106
    %p112 = scmp.eq.s32.totalorder %s9, 0
    %p113 = por %p111, %p112
    %p114 = scmp.ne.s32.totalorder %s103, %s106
    %p115 = scmp.eq.s32.totalorder %s14, 1
    %p116 = por %p114, %p115
    %p117 = scmp.ne.s32.totalorder %s106, %s107
    %p118 = scmp.eq.s32.totalorder %s14, 0
    %p119 = por %p117, %p118
    %p120 = scmp.ne.s32.totalorder %s106, %s107
    %p121 = scmp.eq.s32.totalorder %s15, 1
    %p122 = por %p120, %p121
    %p124 = scmp.ne.s32.totalorder %s107, %s123
    %p125 = scmp.eq.s32.totalorder %s15, 0
    %p126 = por %p124, %p125
    %p127 = scmp.le.s32.totalorder 1, %s9
    %p128 = scmp.lt.s32.totalorder %s9, 3
    %p129 = pnand %p127, %p128
    %p130 = pneg %p129
    // Predicated region
    $region9: #{tpu_custom_call.1} parent=5 // pred_check
      _
    $region10: #{tpu_custom_call.1} parent=5 // pred_check_branch
      %132 = sbr.rel (%p129) target = $region12
    $region11: #{tpu_custom_call.1} parent=5 // pred_region
      %s133 = ssub.s32 %s9, 1
      // Predicated region
      $region13: #{tpu_custom_call.1} parent=11 // pred_check
        %p134 = pneg %p70
      $region14: #{tpu_custom_call.1} parent=11 // pred_check_branch
        %136 = sbr.rel (%p134) target = $region16
      $region15: #{tpu_custom_call.1} parent=11 // pred_region
        _
      $region16: #{tpu_custom_call.1} parent=11 // pred_fallthru
        _
      // Predicated region
      $region17: #{tpu_custom_call.1} parent=11 // pred_check
        %p137 = pneg %p91
      $region18: #{tpu_custom_call.1} parent=11 // pred_check_branch
        %139 = sbr.rel (%p137) target = $region20
      $region19: #{tpu_custom_call.1} parent=11 // pred_region
        _
      $region20: #{tpu_custom_call.1} parent=11 // pred_fallthru
        _
    $region12: #{tpu_custom_call.1} parent=5 // pred_fallthru
      _
    %p140 = scmp.lt.s32.totalorder %s9, 2
    // Predicated region
    $region21: #{tpu_custom_call.1} parent=5 // pred_check
      %p141 = pneg %p140
    $region22: #{tpu_custom_call.1} parent=5 // pred_check_branch
      %143 = sbr.rel (%p141) target = $region24
    $region23: #{tpu_custom_call.1} parent=5 // pred_region
      // Predicated region
      $region25: #{tpu_custom_call.1} parent=23 // pred_check
        %p144 = pneg %p43
      $region26: #{tpu_custom_call.1} parent=23 // pred_check_branch
        %146 = sbr.rel (%p144) target = $region28
      $region27: #{tpu_custom_call.1} parent=23 // pred_region
        %p147 = scmp.lt.s32.totalorder %s16, 1
        %s148 = scalar_select %p147, %s16, 1
        %p149 = scmp.lt.s32.totalorder %s17, 0
        %s150 = scalar_select %p149, %s17, 0
        %s151 = smul.addr %s148, 4
        %s152 = sadd.s32 %s150, %s151
        %s153 = smul.addr %s152, 8
        %s154 = scalar_lea.vmem %s0, %s153
      $region28: #{tpu_custom_call.1} parent=23 // pred_fallthru
        _
    $region24: #{tpu_custom_call.1} parent=5 // pred_fallthru
      _
    %p155 = scmp.le.s32.totalorder 1, %s9
    %p156 = scmp.lt.s32.totalorder %s9, 3
    %p157 = pnand %p155, %p156
    %p158 = pneg %p157
    // Predicated region
    $region29: #{tpu_custom_call.1} parent=5 // pred_check
      _
    $region30: #{tpu_custom_call.1} parent=5 // pred_check_branch
      %160 = sbr.rel (%p157) target = $region32
    $region31: #{tpu_custom_call.1} parent=5 // pred_region
      %s161 = ssub.s32 %s9, 1
      %p162 = scmp.lt.s32.totalorder %s18, 1
      %s163 = scalar_select %p162, %s18, 1
      %p164 = scmp.lt.s32.totalorder %s19, 0
      %s165 = scalar_select %p164, %s19, 0
      %s166 = smul.addr %s163, 4
      %s167 = sadd.s32 %s165, %s166
      %s168 = smul.addr %s167, 8
      %s169 = scalar_lea.vmem %s0, %s168
      %p170 = pneg %p49
      %p171 = pneg %p46
      %p172 = pneg %p70
      %p173 = pneg %p67
      %p174 = pneg %p91
      %p175 = pneg %p88
      %p176 = pneg %p119
      %p177 = pneg %p116
      %p178 = scmp.lt.s32.totalorder %s18, 1
      %s179 = scalar_select %p178, %s18, 1
      %p180 = scmp.lt.s32.totalorder %s19, 0
      %s181 = scalar_select %p180, %s19, 0
      %s182 = smul.addr %s179, 4
      %s183 = sadd.s32 %s181, %s182
      %s184 = smul.addr %s183, 8
      %s185 = scalar_lea.vmem %s3, %s184
      %p186 = scmp.lt.s32.totalorder %s18, 1
      %s187 = scalar_select %p186, %s18, 1
      %p188 = scmp.lt.s32.totalorder %s19, 0
      %s189 = scalar_select %p188, %s19, 0
      %s190 = smul.addr %s187, 4
      %s191 = sadd.s32 %s189, %s190
      %s192 = smul.addr %s191, 8
      %s193 = scalar_lea.vmem %s0, %s192
      %p194 = scmp.lt.s32.totalorder %s18, 1
      %s195 = scalar_select %p194, %s18, 1
      %p196 = scmp.lt.s32.totalorder %s19, 0
      %s197 = scalar_select %p196, %s19, 0
      %s198 = smul.addr %s195, 4
      %s199 = sadd.s32 %s197, %s198
      %s200 = smul.addr %s199, 8
      %s201 = scalar_lea.vmem %s3, %s200
      %v202 = vld [vmem:[%s193] sm:$0xff]
      %v203 = vld [vmem:[%s193 + $0x8] sm:$0xff]
      %v204 = vld [vmem:[%s193 + $0x10] sm:$0xff]
      %v205 = vld [vmem:[%s193 + $0x18] sm:$0xff]
      %vm206 = vcmask 130048
      %v207 = vsel %vm206, %v202, 0.0
      %v208 = vsel %vm206, %v203, 0.0
      %v209 = vadd.f32 %v207, %v208
      %v210 = vsel %vm206, %v204, 0.0
      %v211 = vadd.f32 %v209, %v210
      %v212 = vsel %vm206, %v205, 0.0
      %v213 = vadd.f32 %v211, %v212
      %v214 = vrot.slane %v213, 4
      %v215 = vadd.f32 %v213, %v214
      %v216 = vrot.slane %v215, 2
      %v217 = vadd.f32 %v215, %v216
      %v218 = vrot.slane %v217, 1
      %v219 = vadd.f32 %v217, %v218
      %v220 = vrcp.pop 32.0
      %v221 = vmul.f32 %v219, %v220
      %v222 = vmul.f32 %v202, %v202
      %v223 = vmul.f32 %v203, %v203
      %v224 = vmul.f32 %v204, %v204
      %v225 = vmul.f32 %v205, %v205
      %v226 = vsel %vm206, %v222, 0.0
      %v227 = vsel %vm206, %v223, 0.0
      %v228 = vadd.f32 %v226, %v227
      %v229 = vsel %vm206, %v224, 0.0
      %v230 = vadd.f32 %v228, %v229
      %v231 = vsel %vm206, %v225, 0.0
      %v232 = vadd.f32 %v230, %v231
      %v233 = vrot.slane %v232, 4
      %v234 = vadd.f32 %v232, %v233
      %v235 = vrot.slane %v234, 2
      %v236 = vadd.f32 %v234, %v235
      %v237 = vrot.slane %v236, 1
      %v238 = vadd.f32 %v236, %v237
      %v239 = vmul.f32 %v238, %v220
      %v240 = vmul.f32 %v221, %v221
      %v241 = vsub.f32 %v239, %v240
      %v242 = vmax.f32 %v241, 0.0
      %v243 = vadd.f32 %v242, 1e-05
      %v244 = vrsqrt.pop %v243
      %v245 = vsub.f32 %v202, %v221
      %v246 = vsub.f32 %v203, %v221
      %v247 = vsub.f32 %v204, %v221
      %v248 = vsub.f32 %v205, %v221
      %v249 = vmul.f32 %v245, %v244
      %v250 = vmul.f32 %v246, %v244
      %v251 = vmul.f32 %v247, %v244
      %v252 = vmul.f32 %v248, %v244
      %v253 = vld [vmem:[%s1] sm:$0xff]
      %v254 = vld [vmem:[%s1 + $0x8] sm:$0xff]
      %v255 = vld [vmem:[%s1 + $0x10] sm:$0xff]
      %v256 = vld [vmem:[%s1 + $0x18] sm:$0xff]
      %v257 = vmul.f32 %v249, %v253
      %v258 = vmul.f32 %v250, %v254
      %v259 = vmul.f32 %v251, %v255
      %v260 = vmul.f32 %v252, %v256
      %v261 = vld [vmem:[%s2] sm:$0xff]
      %v262 = vld [vmem:[%s2 + $0x8] sm:$0xff]
      %v263 = vld [vmem:[%s2 + $0x10] sm:$0xff]
      %v264 = vld [vmem:[%s2 + $0x18] sm:$0xff]
      %v265 = vadd.f32 %v257, %v261
      %v266 = vadd.f32 %v258, %v262
      %v267 = vadd.f32 %v259, %v263
      %v268 = vadd.f32 %v260, %v264
      %269 = vst.msk [vmem:[%s201] sm:$0xff] %vm206, %v265
      %270 = vst.msk [vmem:[%s201 + $0x8] sm:$0xff] %vm206, %v266
      %271 = vst.msk [vmem:[%s201 + $0x10] sm:$0xff] %vm206, %v267
      %272 = vst.msk [vmem:[%s201 + $0x18] sm:$0xff] %vm206, %v268
      %p273 = scmp.lt.s32.totalorder %s18, 1
      %s274 = scalar_select %p273, %s18, 1
      %p275 = scmp.lt.s32.totalorder %s19, 0
      %s276 = scalar_select %p275, %s19, 0
      %s277 = smul.addr %s274, 4
      %s278 = sadd.s32 %s276, %s277
      %s279 = smul.addr %s278, 8
      %s280 = scalar_lea.vmem %s3, %s279
      // Predicated region
      $region33: #{tpu_custom_call.1} parent=31 // pred_check
        %p281 = pneg %p116
      $region34: #{tpu_custom_call.1} parent=31 // pred_check_branch
        %283 = sbr.rel (%p281) target = $region36
      $region35: #{tpu_custom_call.1} parent=31 // pred_region
        _
      $region36: #{tpu_custom_call.1} parent=31 // pred_fallthru
        _
    $region32: #{tpu_custom_call.1} parent=5 // pred_fallthru
      _
    %p284 = scmp.le.s32.totalorder 2, %s9
    // Predicated region
    $region37: #{tpu_custom_call.1} parent=5 // pred_check
      %p285 = pneg %p284
    $region38: #{tpu_custom_call.1} parent=5 // pred_check_branch
      %287 = sbr.rel (%p285) target = $region40
    $region39: #{tpu_custom_call.1} parent=5 // pred_region
      %s288 = ssub.s32 %s9, 2
      // Predicated region
      $region41: #{tpu_custom_call.1} parent=39 // pred_check
        %p289 = pneg %p122
      $region42: #{tpu_custom_call.1} parent=39 // pred_check_branch
        %291 = sbr.rel (%p289) target = $region44
      $region43: #{tpu_custom_call.1} parent=39 // pred_region
        %p292 = scmp.lt.s32.totalorder %s20, 1
        %s293 = scalar_select %p292, %s20, 1
        %p294 = scmp.lt.s32.totalorder %s21, 0
        %s295 = scalar_select %p294, %s21, 0
        %s296 = smul.addr %s293, 4
        %s297 = sadd.s32 %s295, %s296
        %s298 = smul.addr %s297, 8
        %s299 = scalar_lea.vmem %s3, %s298
      $region44: #{tpu_custom_call.1} parent=39 // pred_fallthru
        _
    $region40: #{tpu_custom_call.1} parent=5 // pred_fallthru
      _
  $region6: #{tpu_custom_call.1} parent=0 // loop_footer
    %s13 = sadd.s32 1, %s9
  $region7: #{tpu_custom_call.1} parent=0 // loop_footer_branch
    %8 = sbr.rel target = $region3
  $region8: #{tpu_custom_call.1} parent=0 // loop_exit
    _

</llo_original>
